<compile_context>
chip_gen: v7x
topology: tpu7x:2x2x1
jax: 0.10.0
libtpu: 0.0.40
codegen_flags: <defaults>
</compile_context>

<pallas_src>
import functools

import jax
import jax.numpy as jnp
from jax.experimental import pallas as pl
from jax.experimental.pallas import tpu as pltpu


@functools.cache
def _roll_matches_numpy() -> bool:
    """Tiny one-off probe pinning down pltpu.roll's rotation direction.

    Resolved eagerly once (cached) so the 3x3-conv tap shifts use a provably
    correct sign: np.roll semantics mean result[i] = x[i - shift].
    """
    def probe(x_ref, o_ref):
        o_ref[...] = pltpu.roll(x_ref[...], shift=1, axis=1)

    x = jnp.broadcast_to(jnp.arange(128, dtype=jnp.float32), (8, 128))
    out = pl.pallas_call(
        probe, out_shape=jax.ShapeDtypeStruct((8, 128), jnp.float32))(x)
    return bool(out[0, 0] == 127.0)   # np.roll puts x[..., -1] at index 0


def rcab_kernel(x_ref, w1_ref, b1_ref, w2_ref, b2_ref,
                wd1_ref, bd1_ref, wd2_ref, bd2_ref,
                o_ref, patches_ref, *, H, W, roll_np):
    C, L = x_ref.shape
    HW = H * W
    Nb = L // HW
    inv_hw = 1.0 / float(HW)

    # ---- hoisted per-grid-step constants ---------------------------------
    # Edge masks materialized ONCE at full (C, L) as f32 multiplicands (no
    # re-broadcast inside every tap).  They zero both the 'same' padding
    # positions and any cross-image / wrap-around bleed from the cyclic roll.
    lane = jax.lax.broadcasted_iota(jnp.int32, (C, L), 1)
    col = lane % W
    row = (lane % HW) // W
    m_left = (col != 0).astype(jnp.float32)        # tap reads x-1: bad at x == 0
    m_right = (col != W - 1).astype(jnp.float32)   # tap reads x+1: bad at x == W-1
    m_top = (row != 0).astype(jnp.float32)         # tap reads y-1: bad at y == 0
    m_bot = (row != H - 1).astype(jnp.float32)     # tap reads y+1: bad at y == H-1

    # Per-image segment indicators: segmented global-avg-pool / re-expand as
    # tiny MXU matmuls (avoids relayouting res to (C, Nb, HW)).
    seg = (jax.lax.broadcasted_iota(jnp.int32, (L, Nb), 0) // HW
           == jax.lax.broadcasted_iota(jnp.int32, (L, Nb), 1)).astype(jnp.float32)
    seg_t = (jax.lax.broadcasted_iota(jnp.int32, (Nb, L), 1) // HW
             == jax.lax.broadcasted_iota(jnp.int32, (Nb, L), 0)).astype(jnp.float32)

    def conv3x3(inp, w_ref_, b_ref_):
        """inp: (C, L) f32 -> (C, L) f32, per-image 'same' zero padding.

        Taps via pltpu.roll (XLU) + hoisted masks, staged tap-by-tap into the
        bf16 VMEM patches scratch, then ONE K=9C matmul for the whole batch
        block with the bias folded into the f32 epilogue.
        """
        for dy in range(3):
            for dx in range(3):
                off = (dy - 1) * W + (dx - 1)
                if off == 0:
                    t = inp
                else:
                    shift = (-off) % L if roll_np else off % L
                    t = pltpu.roll(inp, shift=shift, axis=1)
                if dy == 0:
                    t = t * m_top
                elif dy == 2:
                    t = t * m_bot
                if dx == 0:
                    t = t * m_left
                elif dx == 2:
                    t = t * m_right
                patches_ref[pl.ds((dy * 3 + dx) * C, C), :] = t.astype(jnp.bfloat16)
        return jnp.dot(w_ref_[...], patches_ref[...],
                       preferred_element_type=jnp.float32) + b_ref_[...]

    x = x_ref[...]                                       # (C, L) f32
    h = jnp.maximum(conv3x3(x, w1_ref, b1_ref), 0.0)     # conv1 + ReLU
    res = conv3x3(h, w2_ref, b2_ref)                     # conv2

    # ---- CALayer: segmented avg-pool + squeeze/excite, all f32 -------------
    ym = jnp.dot(res, seg, preferred_element_type=jnp.float32) * inv_hw   # (C, Nb)
    s = jnp.maximum(
        jnp.dot(wd1_ref[...], ym, preferred_element_type=jnp.float32) + bd1_ref[...],
        0.0)                                                              # (Cr, Nb)
    y = jax.nn.sigmoid(
        jnp.dot(wd2_ref[...], s, preferred_element_type=jnp.float32) + bd2_ref[...])
    y_full = jnp.dot(y, seg_t, preferred_element_type=jnp.float32)        # (C, L)

    # ---- scale + residual add; lane-dense (multiple-of-128) store ----------
    o_ref[...] = (res * y_full + x).astype(o_ref.dtype)


def _pick_batch_block(n, hw, lane_budget=4096):
    """Largest divisor of n that keeps the folded lane slab <= lane_budget
    lanes and (for v7x megacore) leaves >= 2 grid steps when n >= 2."""
    cap = max(1, lane_budget // hw)
    if n >= 2:
        cap = min(cap, n // 2)
    best = 1
    for d in range(1, n + 1):
        if n % d == 0 and d <= cap:
            best = d
    return best


def rcab_pallas(x_nchw, params, *, batch_block=None):
    """x_nchw: (N, C, H, W) float32, params in PyTorch layouts."""
    w1, b1, w2, b2, wd1, bd1, wd2, bd2 = params
    N, C, H, W = x_nchw.shape
    HW = H * W
    Cr = wd1.shape[0]
    if batch_block is None:
        batch_block = _pick_batch_block(N, HW)
    assert N % batch_block == 0, "batch_block must divide N"
    Nb = batch_block
    L = Nb * HW

    # One-time (tiny) parameter re-layouts done by XLA outside the kernel:
    #   conv weights (Cout, Cin, kh, kw) -> (Cout, 9*Cin) matching the im2col
    #   row order (dy, dx, cin), cast to bf16 (MXU operands; f32 accumulate),
    #   biases as f32 columns, CALayer 1x1 convs as small f32 matrices.
    w1_k = jnp.transpose(w1, (0, 2, 3, 1)).reshape(C, 9 * C).astype(jnp.bfloat16)
    w2_k = jnp.transpose(w2, (0, 2, 3, 1)).reshape(C, 9 * C).astype(jnp.bfloat16)
    b1_k = b1.reshape(C, 1).astype(jnp.float32)
    b2_k = b2.reshape(C, 1).astype(jnp.float32)
    wd1_k = wd1[:, :, 0, 0].astype(jnp.float32)          # (Cr, C)
    bd1_k = bd1.reshape(Cr, 1).astype(jnp.float32)
    wd2_k = wd2[:, :, 0, 0].astype(jnp.float32)          # (C, Cr)
    bd2_k = bd2.reshape(C, 1).astype(jnp.float32)

    # Channel-major slab with the whole batch on the lane axis:
    # x_cl[c, n*HW + y*W + x] = x[n, c, y, x].
    x_cl = jnp.transpose(x_nchw, (1, 0, 2, 3)).reshape(C, N * HW)

    def full_spec(arr):
        nd = arr.ndim
        return pl.BlockSpec(arr.shape, lambda n, _nd=nd: (0,) * _nd)

    grid_spec = pltpu.PrefetchScalarGridSpec(
        num_scalar_prefetch=0,
        grid=(N // Nb,),
        in_specs=[
            pl.BlockSpec((C, L), lambda n: (0, n)),
            full_spec(w1_k), full_spec(b1_k),
            full_spec(w2_k), full_spec(b2_k),
            full_spec(wd1_k), full_spec(bd1_k),
            full_spec(wd2_k), full_spec(bd2_k),
        ],
        out_specs=pl.BlockSpec((C, L), lambda n: (0, n)),
        # bf16 im2col patches scratch.  Per-step VMEM: ~4*C*L*4B (in+out,
        # double-buffered) + ~10 KiB weights + 9C*L*2B patches -- far below
        # even v7x's 64 MiB / 32 MiB scoped default, so no limit override.
        scratch_shapes=[pltpu.VMEM((9 * C, L), jnp.bfloat16)],
    )

    out = pl.pallas_call(
        functools.partial(rcab_kernel, H=H, W=W, roll_np=_roll_matches_numpy()),
        out_shape=jax.ShapeDtypeStruct((C, N * HW), x_nchw.dtype),
        grid_spec=grid_spec,
        compiler_params=pltpu.CompilerParams(
            # Batch-block axis is embarrassingly parallel: lets v7x shard it
            # across both TensorCores; neutral on single-TC v5e/v6e.
            dimension_semantics=("parallel",)),
    )(x_cl, w1_k, b1_k, w2_k, b2_k, wd1_k, bd1_k, wd2_k, bd2_k)

    return jnp.transpose(out.reshape(C, N, H, W), (1, 0, 2, 3))


def rcab_reference(x, params):
    """Pure-JAX reference in NCHW, mirrors the PyTorch module exactly (f32)."""
    w1, b1, w2, b2, wd1, bd1, wd2, bd2 = params
    dn = ('NCHW', 'OIHW', 'NCHW')
    conv = lambda v, w: jax.lax.conv_general_dilated(
        v, w, (1, 1), 'SAME', dimension_numbers=dn)
    h = jax.nn.relu(conv(x, w1) + b1.reshape(1, -1, 1, 1))
    r = conv(h, w2) + b2.reshape(1, -1, 1, 1)
    y = r.mean(axis=(2, 3), keepdims=True)                       # (N, C, 1, 1)
    y = jax.nn.relu(conv(y, wd1) + bd1.reshape(1, -1, 1, 1))     # 1x1 squeeze
    y = jax.nn.sigmoid(conv(y, wd2) + bd2.reshape(1, -1, 1, 1))  # 1x1 excite
    return r * y + x


if __name__ == "__main__":
    # Shapes consistent with RCAB(conv, n_feat=16, kernel_size=3, reduction=4).
    N, C, H, W = 8, 16, 16, 16
    reduction = 4
    Cr = C // reduction

    key = jax.random.PRNGKey(0)
    ks = jax.random.split(key, 9)
    x = jax.random.normal(ks[0], (N, C, H, W), jnp.float32)          # NCHW input
    w1 = jax.random.normal(ks[1], (C, C, 3, 3), jnp.float32) * 0.1   # conv1 (OIHW)
    b1 = jax.random.normal(ks[2], (C,), jnp.float32) * 0.1
    w2 = jax.random.normal(ks[3], (C, C, 3, 3), jnp.float32) * 0.1   # conv2 (OIHW)
    b2 = jax.random.normal(ks[4], (C,), jnp.float32) * 0.1
    wd1 = jax.random.normal(ks[5], (Cr, C, 1, 1), jnp.float32) * 0.1  # squeeze 1x1
    bd1 = jax.random.normal(ks[6], (Cr,), jnp.float32) * 0.1
    wd2 = jax.random.normal(ks[7], (C, Cr, 1, 1), jnp.float32) * 0.1  # excite 1x1
    bd2 = jax.random.normal(ks[8], (C,), jnp.float32) * 0.1
    params = (w1, b1, w2, b2, wd1, bd1, wd2, bd2)

    # Auto batch_block folds 4 images per grid step here (grid = 2, so a v7x
    # chip still runs one step per TensorCore); each conv is one K=144 matmul
    # over a (C, 1024) lane slab.
    out = jax.block_until_ready(rcab_pallas(x, params))

    ref = rcab_reference(x, params)
    max_err = float(jnp.max(jnp.abs(out - ref)))
    # bf16 MXU operands for the two 3x3 convs (f32 accumulate) => tolerance is
    # looser than the pure-f32 version; observed error is ~1e-2-level.
    assert jnp.allclose(out, ref, atol=5e-2, rtol=5e-2), f"max_err={max_err}"
    print("KERNEL_OK")
</pallas_src>

<mosaic_0001>
module attributes {stable_mosaic.version = 11 : i64} {
  func.func @probe(%arg0: memref<8x128xf32, #tpu.memory_space<vmem>>, %arg1: memref<8x128xf32, #tpu.memory_space<vmem>>) attributes {dimension_semantics = [], scalar_prefetch = 0 : i64, scratch_operands = 0 : i64, tpu.core_type = #tpu.core_type<tc>} {
    %c0 = arith.constant 0 : index
    %c0_0 = arith.constant 0 : index
    %0 = vector.load %arg0[%c0, %c0_0] : memref<8x128xf32, #tpu.memory_space<vmem>>, vector<8x128xf32>
    %c1_i32 = arith.constant 1 : i32
    %1 = tpu.dynamic_rotate %0 by %c1_i32 dim 1 : vector<8x128xf32>, i32 -> vector<8x128xf32>
    %c0_1 = arith.constant 0 : index
    %c0_2 = arith.constant 0 : index
    %2 = vector.load %arg1[%c0_1, %c0_2] : memref<8x128xf32, #tpu.memory_space<vmem>>, vector<8x128xf32>
    tpu.vector_store %arg1[%c0_1, %c0_2], %1 {strides = array<i32>} : memref<8x128xf32, #tpu.memory_space<vmem>>, vector<8x128xf32>,
    return
  }
}

</mosaic_0001>

<llo_original>
// kernel: tpu_custom_call.1
$region0: #{tpu_custom_call.1}
  #allocation0 [shape = 'u32[]', space=smem, size = 0x4, offset = 0x4, fixed_abs, tag = 'smem constant byte address 0x4 - core index']
  #allocation1 [shape = 'u32[144,128]{1,0:T(1,128)}', space=vmem, size = 0x12000, scoped, tag = 'internal scratch']
  %s0 = inlined_call_operand.hbm [shape: f32[8,128], index: 0, kind: input, shape index: {}]
  %s1 = inlined_call_operand.hbm [shape: f32[8,128], index: 1, kind: output, shape index: {}]
  %s2 = sld [smem:[#allocation0]]
  $region18: #{tpu_custom_call.1} parent=0
    _
  %s4 = ssub.s32 1, %s2
  %s5 = scalar_select 0, %s4, %s2
  $region1: #{tpu_custom_call.1} parent=0
    #allocation2 [shape = 'u8[4096]{0}', space=vmem, size = 0x1000, scoped, tag = 'input window, operand 0, single buffered']
    #allocation3 [shape = 's32[1]{0}', space=sflag, size = 0x4, scoped, tag = 'scoped memory for tpu_custom_call.1']
    #allocation4 [shape = 's32[1]{0}', space=sflag, size = 0x4, scoped, tag = 'scoped memory for tpu_custom_call.1']
    #allocation5 [shape = 'u8[4096]{0}', space=vmem, size = 0x1000, scoped, tag = 'output window, operand 0, single buffered']
    %6 = vsyncpa [#allocation3], 0
    %7 = vsyncpa [#allocation4], 0
    // Predicated region
    $region2: #{tpu_custom_call.1} parent=1 // pred_check
      _
    $region3: #{tpu_custom_call.1} parent=1 // pred_check_branch
      %9 = sbr.rel (0) target = $region5
    $region4: #{tpu_custom_call.1} parent=1 // pred_region
      %s11 = ssub.s32 128, 128
      %12 = vsyncadd [#allocation3], %s11
      %s14 = sshll.u32 [#allocation2], 4
      %s15 = int_to_ptr.vmem [resolvable:$true] %s14
      %17 = dma.hbm_to_vmem [thread:$0]  %s0, 128, %s15, [#allocation3]
    $region5: #{tpu_custom_call.1} parent=1 // pred_fallthru
      _
    // Predicated region
    $region6: #{tpu_custom_call.1} parent=1 // pred_check
      _
    $region7: #{tpu_custom_call.1} parent=1 // pred_check_branch
      %19 = sbr.rel (0) target = $region9
    $region8: #{tpu_custom_call.1} parent=1 // pred_region
      %20 = dma.done [#allocation3], 128
    $region9: #{tpu_custom_call.1} parent=1 // pred_fallthru
      _
    %v21 = vld [vmem:[#allocation2] sm:$0xff]
    %22 = vrot.lane.b32.xlu0 %v21, 1
    %v23 = vpop.permute.xlu0 %22
    %24 = vst [vmem:[#allocation5] sm:$0xff] %v23
    // Predicated region
    $region10: #{tpu_custom_call.1} parent=1 // pred_check
      _
    $region11: #{tpu_custom_call.1} parent=1 // pred_check_branch
      %26 = sbr.rel (0) target = $region13
    $region12: #{tpu_custom_call.1} parent=1 // pred_region
      %s28 = ssub.s32 128, 128
      %29 = vsyncadd [#allocation4], %s28
      %s31 = sshll.u32 [#allocation5], 4
      %s32 = int_to_ptr.vmem [resolvable:$true] %s31
      %34 = dma.vmem_to_hbm [thread:$0]  %s32, 128, %s1, [#allocation4]
    $region13: #{tpu_custom_call.1} parent=1 // pred_fallthru
      _
    // Predicated region
    $region14: #{tpu_custom_call.1} parent=1 // pred_check
      _
    $region15: #{tpu_custom_call.1} parent=1 // pred_check_branch
      %36 = sbr.rel (0) target = $region17
    $region16: #{tpu_custom_call.1} parent=1 // pred_region
      %37 = dma.done [#allocation4], 128
    $region17: #{tpu_custom_call.1} parent=1 // pred_fallthru
      _
    %38 = vsyncpa [#allocation3], 1
    %39 = vsyncpa [#allocation4], 1

</llo_original>
